<compile_context>
chip_gen: v7x
topology: tpu7x:2x2x1
jax: 0.10.0
libtpu: 0.0.40
codegen_flags: <defaults>
</compile_context>

<pallas_src>
import jax
import jax.numpy as jnp
from jax.experimental import pallas as pl
from jax.experimental.pallas import tpu as pltpu


def _scale_conv1x1_kernel(w_ref, s_ref, x_ref, o_ref):
    # Fold per-channel scale into the (bf16) weight slice: (co_blk, Cin) VPU
    # mults, negligible next to the MXU matmul (kept in-body on purpose, see
    # header comment).
    ws = (w_ref[...].astype(jnp.float32) * s_ref[...]).astype(jnp.bfloat16)  # (co_blk, Cin)
    x = x_ref[...].astype(jnp.bfloat16)                                      # (Cin, HW)
    o_ref[...] = jnp.dot(
        ws, x, preferred_element_type=jnp.float32
    ).astype(o_ref.dtype)                                                    # (co_blk, HW)


def mul_conv1x1(x_nchw, scale_ns_c11, weight_oi, *, cout_blocks=None):
    """x_nchw: (N, Cin, H, W) f32; scale_ns_c11: (Ns, Cin, 1, 1) with Ns in {1, N};
    weight_oi: (Cout, Cin) f32 (torch Conv2d weight squeezed)."""
    N, Cin, H, W = x_nchw.shape
    Cout = weight_oi.shape[0]
    Ns = scale_ns_c11.shape[0]
    assert Ns in (1, N), "scale must be shared (Ns=1) or per-sample (Ns=N)"
    HW = H * W

    # v7x latency option: at N == 1, split Cout across the two TensorCores.
    if cout_blocks is None:
        cout_blocks = 2 if (N == 1 and Cout % 2 == 0 and (Cout // 2) % 8 == 0) else 1
    assert Cout % cout_blocks == 0
    co_blk = Cout // cout_blocks

    # Free views only -- no layout plumbing in the wrapper.
    x3d = x_nchw.reshape(N, Cin, HW)
    s3d = scale_ns_c11.reshape(Ns, 1, Cin)
    # Static weight: one-time bf16 cast (amortized across calls in deployment).
    w_bf16 = weight_oi.astype(jnp.bfloat16)

    if Ns == 1:
        s_map = lambda n, j: (0, 0, 0)
    else:
        s_map = lambda n, j: (n, 0, 0)   # per-sample SE scale handled correctly

    cost = pl.CostEstimate(
        flops=2 * N * Cout * Cin * HW,
        transcendentals=0,
        bytes_accessed=(x3d.size * 4 + w_bf16.size * 2 + s3d.size * 4
                        + N * Cout * HW * 4),
    )

    out3d = pl.pallas_call(
        _scale_conv1x1_kernel,
        out_shape=jax.ShapeDtypeStruct((N, Cout, HW), jnp.float32),
        grid=(N, cout_blocks),
        in_specs=[
            # weight slice per Cout block (re-fetched only when j changes)
            pl.BlockSpec((co_blk, Cin), lambda n, j: (j, 0)),
            # per-channel scale (batch-indexed iff per-sample)
            pl.BlockSpec((None, 1, Cin), s_map),
            # X block index depends only on n -> not re-DMA'd across the j axis
            pl.BlockSpec((None, Cin, HW), lambda n, j: (n, 0, 0)),
        ],
        out_specs=pl.BlockSpec((None, co_blk, HW), lambda n, j: (n, j, 0)),
        compiler_params=pltpu.CompilerParams(
            dimension_semantics=("parallel", "parallel"),
            # ~1.7 MiB double-buffered working set; keep the scoped request small
            vmem_limit_bytes=8 << 20,
        ),
        cost_estimate=cost,
    )(w_bf16, s3d, x3d)

    return out3d.reshape(N, Cout, H, W)


if __name__ == "__main__":
    # Shapes fixed by the module: Conv2d(672, 112, 1x1), inputs 1x672x14x14.
    N, Cin, H, W = 1, 672, 14, 14
    Cout = 112

    key = jax.random.PRNGKey(0)
    k1, k2, k3 = jax.random.split(key, 3)

    x201 = jax.random.normal(k1, (N, Cin, H, W), dtype=jnp.float32)        # feature map
    x206 = jax.random.normal(k2, (1, Cin, 1, 1), dtype=jnp.float32)        # SE scale
    weight = jax.random.normal(k3, (Cout, Cin), dtype=jnp.float32) * 0.02  # 1x1 conv weight

    out = mul_conv1x1(x201, x206, weight)
    out = jax.block_until_ready(out)
    assert out.shape == (N, Cout, H, W)

    # (a) tight check against a reference with the same bf16 operand precision
    #     as the kernel's MXU inputs (f32 accumulation).
    ws_bf16 = (
        weight.astype(jnp.bfloat16).astype(jnp.float32) * x206.reshape(1, Cin)
    ).astype(jnp.bfloat16).astype(jnp.float32)
    x_bf16 = x201.astype(jnp.bfloat16).astype(jnp.float32)
    ref_bf16 = jnp.einsum(
        "oc,nchw->nohw", ws_bf16, x_bf16, precision=jax.lax.Precision.HIGHEST
    )
    assert bool(jnp.allclose(out, ref_bf16, atol=2e-3, rtol=2e-3))

    # (b) loose check against the original full-f32 module semantics
    #     (bf16 operands introduce ~0.3% relative error on this contraction).
    ref_f32 = jnp.einsum(
        "oc,nchw->nohw", weight, x206 * x201, precision=jax.lax.Precision.HIGHEST
    )
    assert bool(jnp.allclose(out, ref_f32, atol=5e-2, rtol=5e-2))

    print("KERNEL_OK")
</pallas_src>

<mosaic_0001>
module attributes {stable_mosaic.version = 11 : i64} {
  func.func @_scale_conv1x1_kernel(%arg0: i32, %arg1: i32, %arg2: memref<56x672xbf16, #tpu.memory_space<vmem>>, %arg3: memref<1x1x672xf32, #tpu.memory_space<vmem>>, %arg4: memref<1x672x196xf32, #tpu.memory_space<vmem>>, %arg5: memref<1x56x196xf32, #tpu.memory_space<vmem>>) attributes {dimension_semantics = [#tpu.dimension_semantics<parallel>, #tpu.dimension_semantics<parallel>], iteration_bounds = array<i64: 1, 2>, scalar_prefetch = 0 : i64, scratch_operands = 0 : i64, tpu.core_type = #tpu.core_type<tc>, window_params = [{transform_indices = @transform_0, window_bounds = array<i64: 56, 672>}, {pipeline_mode = #tpu.pipeline_mode<synchronous>, transform_indices = @transform_1, window_bounds = array<i64: 1, 1, 672>}, {transform_indices = @transform_2, window_bounds = array<i64: 1, 672, 196>}, {transform_indices = @transform_3, window_bounds = array<i64: 1, 56, 196>}]} {
    %c0 = arith.constant 0 : index
    %c0_0 = arith.constant 0 : index
    %0 = vector.load %arg2[%c0, %c0_0] : memref<56x672xbf16, #tpu.memory_space<vmem>>, vector<56x672xbf16>
    %1 = arith.extf %0 : vector<56x672xbf16> to vector<56x672xf32>
    %c0_1 = arith.constant 0 : index
    %c0_2 = arith.constant 0 : index
    %c0_3 = arith.constant 0 : index
    %2 = vector.load %arg3[%c0_1, %c0_2, %c0_3] : memref<1x1x672xf32, #tpu.memory_space<vmem>>, vector<1x1x672xf32>
    %3 = vector.shape_cast %2 : vector<1x1x672xf32> to vector<1x672xf32>
    %4 = vector.broadcast %3 : vector<1x672xf32> to vector<56x672xf32>
    %5 = arith.mulf %1, %4 : vector<56x672xf32>
    %6 = arith.truncf %5 : vector<56x672xf32> to vector<56x672xbf16>
    %c0_4 = arith.constant 0 : index
    %c0_5 = arith.constant 0 : index
    %c0_6 = arith.constant 0 : index
    %7 = vector.load %arg4[%c0_4, %c0_5, %c0_6] : memref<1x672x196xf32, #tpu.memory_space<vmem>>, vector<1x672x196xf32>
    %8 = vector.shape_cast %7 : vector<1x672x196xf32> to vector<672x196xf32>
    %9 = arith.truncf %8 : vector<672x196xf32> to vector<672x196xbf16>
    %cst = arith.constant dense<0.000000e+00> : vector<56x196xf32>
    %10 = tpu.matmul %6, %9, %cst {dimension_numbers = #tpu.dot_dimension_numbers<[1], [0], [0], [1], [0, 0, 1, 1], [], []>} : vector<56x672xbf16>, vector<672x196xbf16>, vector<56x196xf32> -> vector<56x196xf32>
    %c0_7 = arith.constant 0 : index
    %c0_8 = arith.constant 0 : index
    %c0_9 = arith.constant 0 : index
    %11 = vector.load %arg5[%c0_7, %c0_8, %c0_9] : memref<1x56x196xf32, #tpu.memory_space<vmem>>, vector<1x56x196xf32>
    %12 = vector.shape_cast %11 : vector<1x56x196xf32> to vector<56x196xf32>
    %13 = vector.shape_cast %10 : vector<56x196xf32> to vector<1x56x196xf32>
    tpu.vector_store %arg5[%c0_7, %c0_8, %c0_9], %13 {strides = array<i32>} : memref<1x56x196xf32, #tpu.memory_space<vmem>>, vector<1x56x196xf32>,
    return
  }
  func.func @transform_0(%arg0: i32, %arg1: i32) -> (i32, i32) {
    %c0_i32 = arith.constant 0 : i32
    %c0_i32_0 = arith.constant 0 : i32
    return %arg1, %c0_i32 : i32, i32
  }
  func.func @transform_1(%arg0: i32, %arg1: i32) -> (i32, i32, i32) {
    %c0_i32 = arith.constant 0 : i32
    %c0_i32_0 = arith.constant 0 : i32
    %c0_i32_1 = arith.constant 0 : i32
    %c0_i32_2 = arith.constant 0 : i32
    return %c0_i32, %c0_i32_0, %c0_i32_1 : i32, i32, i32
  }
  func.func @transform_2(%arg0: i32, %arg1: i32) -> (i32, i32, i32) {
    %c0_i32 = arith.constant 0 : i32
    %c0_i32_0 = arith.constant 0 : i32
    %c0_i32_1 = arith.constant 0 : i32
    return %arg0, %c0_i32, %c0_i32_0 : i32, i32, i32
  }
  func.func @transform_3(%arg0: i32, %arg1: i32) -> (i32, i32, i32) {
    %c0_i32 = arith.constant 0 : i32
    %c0_i32_0 = arith.constant 0 : i32
    return %arg0, %arg1, %c0_i32 : i32, i32, i32
  }
}

</mosaic_0001>

<llo_original>
// kernel: tpu_custom_call.1
$region0: #{tpu_custom_call.1}
  #allocation0 [shape = 'u32[]', space=smem, size = 0x4, offset = 0x4, fixed_abs, tag = 'smem constant byte address 0x4 - core index']
  #allocation1 [shape = 'u32[144,128]{1,0:T(1,128)}', space=vmem, size = 0x12000, scoped, tag = 'internal scratch']
  %s0 = inlined_call_operand.vmem [shape: bf16[112,672], index: 0, kind: input, shape index: {}]
  %s1 = inlined_call_operand.vmem [shape: f32[1,1,672], index: 1, kind: input, shape index: {}]
  %s2 = inlined_call_operand.vmem [shape: f32[1,672,196], index: 2, kind: input, shape index: {}]
  %s3 = inlined_call_operand.vmem [shape: f32[1,112,196], index: 3, kind: output, shape index: {}]
  %s4 = sld [smem:[#allocation0]]
  $region45: #{tpu_custom_call.1} parent=0
    _
  %s6 = ssub.s32 1, %s4
  %s7 = scalar_select 0, %s6, %s4
  loop: start=0, step=1, limit=4
  $region2: #{tpu_custom_call.1} parent=0 // loop_pre_header
    _
  $region3: #{tpu_custom_call.1} parent=0 // loop_header
    %s9 = sphi 0, %s13
    %p10 = scmp.ge.s32.totalorder %s9, 4
    %s16 = sphi 0, %s28
    %s17 = sphi 0, %s24
    %s18 = sphi 0, %s16
    %s19 = sphi 0, %s17
    %s20 = sphi 0, %s18
    %s21 = sphi 0, %s19
    %s31 = sphi 0, %s33
    %s34 = sphi 0, %s31
    %s35 = sphi 0, %s34
    %s51 = sphi 0, %s35
    %s55 = sphi 0, %s55
    %s57 = sphi 0, %s55
    %s58 = sphi 0, %s57
    %s72 = sphi 0, %s58
    %s78 = sphi 0, %s80
    %s81 = sphi 0, %s78
    %s82 = sphi 0, %s81
    %s98 = sphi 0, %s82
    %s106 = sphi 0, %s108
    %s109 = sphi 0, %s106
    %s110 = sphi 0, %s109
    %s126 = sphi 0, %s110
  $region4: #{tpu_custom_call.1} parent=0 // loop_header_branch
    %12 = sbr.rel (%p10) target = $region8
  $region5: #{tpu_custom_call.1} parent=0 // loop_body
    %s14 = ssub.s32 %s9, 1
    %s15 = ssub.s32 %s9, 2
    %s22 = sadd.s32 1, %s17
    %p23 = scmp.ge.s32.totalorder %s22, 2
    %s24 = scalar_select %p23, 0, %s22
    %s25 = sadd.s32 1, %s16
    %s26 = scalar_select %p23, %s25, %s16
    %p27 = scmp.ge.s32.totalorder %s26, 1
    %s28 = scalar_select %p27, 0, %s26
    %s29 = ssub.s32 %s17, %s24
    %p30 = scmp.eq.s32.totalorder %s29, 0
    %s32 = sadd.s32 %s31, 1
    %s33 = scalar_select %p30, %s31, %s32
    %p36 = pneg %p30
    %p37 = scmp.eq.s32.totalorder %s9, 1
    %p38 = por %p36, %p37
    %p39 = scmp.ne.s32.totalorder %s31, %s34
    %p40 = scmp.eq.s32.totalorder %s9, 0
    %p41 = por %p39, %p40
    %p42 = scmp.ne.s32.totalorder %s31, %s34
    %p43 = scmp.eq.s32.totalorder %s14, 1
    %p44 = por %p42, %p43
    %p45 = scmp.ne.s32.totalorder %s34, %s35
    %p46 = scmp.eq.s32.totalorder %s14, 0
    %p47 = por %p45, %p46
    %p48 = scmp.ne.s32.totalorder %s34, %s35
    %p49 = scmp.eq.s32.totalorder %s15, 1
    %p50 = por %p48, %p49
    %p52 = scmp.ne.s32.totalorder %s35, %s51
    %p53 = scmp.eq.s32.totalorder %s15, 0
    %p54 = por %p52, %p53
    %s56 = sadd.s32 %s55, 1
    %p59 = scmp.eq.s32.totalorder %s9, 1
    %p60 = scmp.ne.s32.totalorder %s55, %s57
    %p61 = scmp.eq.s32.totalorder %s9, 0
    %p62 = por %p60, %p61
    %p63 = scmp.ne.s32.totalorder %s55, %s57
    %p64 = scmp.eq.s32.totalorder %s14, 1
    %p65 = por %p63, %p64
    %p66 = scmp.ne.s32.totalorder %s57, %s58
    %p67 = scmp.eq.s32.totalorder %s14, 0
    %p68 = por %p66, %p67
    %p69 = scmp.ne.s32.totalorder %s57, %s58
    %p70 = scmp.eq.s32.totalorder %s15, 1
    %p71 = por %p69, %p70
    %p73 = scmp.ne.s32.totalorder %s58, %s72
    %p74 = scmp.eq.s32.totalorder %s15, 0
    %p75 = por %p73, %p74
    %s76 = ssub.s32 %s16, %s28
    %p77 = scmp.eq.s32.totalorder %s76, 0
    %s79 = sadd.s32 %s78, 1
    %s80 = scalar_select %p77, %s78, %s79
    %p83 = pneg %p77
    %p84 = scmp.eq.s32.totalorder %s9, 1
    %p85 = por %p83, %p84
    %p86 = scmp.ne.s32.totalorder %s78, %s81
    %p87 = scmp.eq.s32.totalorder %s9, 0
    %p88 = por %p86, %p87
    %p89 = scmp.ne.s32.totalorder %s78, %s81
    %p90 = scmp.eq.s32.totalorder %s14, 1
    %p91 = por %p89, %p90
    %p92 = scmp.ne.s32.totalorder %s81, %s82
    %p93 = scmp.eq.s32.totalorder %s14, 0
    %p94 = por %p92, %p93
    %p95 = scmp.ne.s32.totalorder %s81, %s82
    %p96 = scmp.eq.s32.totalorder %s15, 1
    %p97 = por %p95, %p96
    %p99 = scmp.ne.s32.totalorder %s82, %s98
    %p100 = scmp.eq.s32.totalorder %s15, 0
    %p101 = por %p99, %p100
    %s102 = ssub.s32 %s16, %s28
    %s103 = ssub.s32 %s17, %s24
    %s104 = sor.u32 %s102, %s103
    %p105 = scmp.eq.s32.totalorder %s104, 0
    %s107 = sadd.s32 %s106, 1
    %s108 = scalar_select %p105, %s106, %s107
    %p111 = pneg %p105
    %p112 = scmp.eq.s32.totalorder %s9, 1
    %p113 = por %p111, %p112
    %p114 = scmp.ne.s32.totalorder %s106, %s109
    %p115 = scmp.eq.s32.totalorder %s9, 0
    %p116 = por %p114, %p115
    %p117 = scmp.ne.s32.totalorder %s106, %s109
    %p118 = scmp.eq.s32.totalorder %s14, 1
    %p119 = por %p117, %p118
    %p120 = scmp.ne.s32.totalorder %s109, %s110
    %p121 = scmp.eq.s32.totalorder %s14, 0
    %p122 = por %p120, %p121
    %p123 = scmp.ne.s32.totalorder %s109, %s110
    %p124 = scmp.eq.s32.totalorder %s15, 1
    %p125 = por %p123, %p124
    %p127 = scmp.ne.s32.totalorder %s110, %s126
    %p128 = scmp.eq.s32.totalorder %s15, 0
    %p129 = por %p127, %p128
    %p130 = scmp.le.s32.totalorder 1, %s9
    %p131 = scmp.lt.s32.totalorder %s9, 3
    %p132 = pnand %p130, %p131
    %p133 = pneg %p132
    // Predicated region
    $region9: #{tpu_custom_call.1} parent=5 // pred_check
      _
    $region10: #{tpu_custom_call.1} parent=5 // pred_check_branch
      %135 = sbr.rel (%p132) target = $region12
    $region11: #{tpu_custom_call.1} parent=5 // pred_region
      %s136 = ssub.s32 %s9, 1
      // Predicated region
      $region13: #{tpu_custom_call.1} parent=11 // pred_check
        %p137 = pneg %p68
      $region14: #{tpu_custom_call.1} parent=11 // pred_check_branch
        %139 = sbr.rel (%p137) target = $region16
      $region15: #{tpu_custom_call.1} parent=11 // pred_region
        _
      $region16: #{tpu_custom_call.1} parent=11 // pred_fallthru
        _
      // Predicated region
      $region17: #{tpu_custom_call.1} parent=11 // pred_check
        %p140 = pneg %p94
      $region18: #{tpu_custom_call.1} parent=11 // pred_check_branch
        %142 = sbr.rel (%p140) target = $region20
      $region19: #{tpu_custom_call.1} parent=11 // pred_region
        %p143 = scmp.lt.s32.totalorder %s18, 0
        %s144 = scalar_select %p143, %s18, 0
        %s145 = smul.addr %s144, 168
        %s146 = smul.addr %s145, 8
        %s147 = scalar_lea.vmem %s2, %s146
      $region20: #{tpu_custom_call.1} parent=11 // pred_fallthru
        _
    $region12: #{tpu_custom_call.1} parent=5 // pred_fallthru
      _
    %p148 = scmp.lt.s32.totalorder %s9, 2
    // Predicated region
    $region21: #{tpu_custom_call.1} parent=5 // pred_check
      %p149 = pneg %p148
    $region22: #{tpu_custom_call.1} parent=5 // pred_check_branch
      %151 = sbr.rel (%p149) target = $region24
    $region23: #{tpu_custom_call.1} parent=5 // pred_region
      // Predicated region
      $region25: #{tpu_custom_call.1} parent=23 // pred_check
        %p152 = pneg %p41
      $region26: #{tpu_custom_call.1} parent=23 // pred_check_branch
        %154 = sbr.rel (%p152) target = $region28
      $region27: #{tpu_custom_call.1} parent=23 // pred_region
        %s155 = smul.u32 7, %s17
        %p156 = scmp.lt.s32.totalorder %s155, 13
        %s157 = scalar_select %p156, %s155, 13
        %s158 = smul.addr %s157, 6
        %s159 = smul.addr %s158, 4
        %s160 = scalar_lea.vmem %s0, %s159
        %s161 = smul.u32 7, %s17
      $region28: #{tpu_custom_call.1} parent=23 // pred_fallthru
        _
    $region24: #{tpu_custom_call.1} parent=5 // pred_fallthru
      _
    %p162 = scmp.le.s32.totalorder 1, %s9
    %p163 = scmp.lt.s32.totalorder %s9, 3
    %p164 = pnand %p162, %p163
    %p165 = pneg %p164
    // Predicated region
    $region29: #{tpu_custom_call.1} parent=5 // pred_check
      _
    $region30: #{tpu_custom_call.1} parent=5 // pred_check_branch
      %167 = sbr.rel (%p164) target = $region32
    $region31: #{tpu_custom_call.1} parent=5 // pred_region
      %s168 = ssub.s32 %s9, 1
      %s169 = smul.u32 7, %s19
      %p170 = scmp.lt.s32.totalorder %s169, 13
      %s171 = scalar_select %p170, %s169, 13
      %s172 = smul.addr %s171, 6
      %s173 = smul.addr %s172, 4
      %s174 = scalar_lea.vmem %s0, %s173
      %p175 = pneg %p47
      %p176 = pneg %p44
      %p177 = pneg %p68
      %p178 = pneg %p65
      %p179 = scmp.lt.s32.totalorder %s18, 0
      %s180 = scalar_select %p179, %s18, 0
      %s181 = smul.addr %s180, 168
      %s182 = smul.addr %s181, 8
      %s183 = scalar_lea.vmem %s2, %s182
      %p184 = pneg %p94
      %p185 = pneg %p91
      %p186 = pneg %p122
      %p187 = pneg %p119
      %s188 = smul.u32 7, %s19
      %p189 = scmp.lt.s32.totalorder %s18, 0
      %s190 = scalar_select %p189, %s18, 0
      %p191 = scmp.lt.s32.totalorder %s188, 13
      %s192 = scalar_select %p191, %s188, 13
      %s193 = smul.addr %s192, 2
      %s194 = smul.addr %s190, 28
      %s195 = sadd.s32 %s193, %s194
      %s196 = smul.addr %s195, 8
      %s197 = scalar_lea.vmem %s3, %s196
      %s198 = smul.u32 7, %s19
      %p199 = scmp.lt.s32.totalorder %s198, 13
      %s200 = scalar_select %p199, %s198, 13
      %s201 = smul.addr %s200, 6
      %s202 = smul.addr %s201, 4
      %s203 = scalar_lea.vmem %s0, %s202
      %s204 = smul.u32 7, %s19
      %p205 = scmp.lt.s32.totalorder %s18, 0
      %s206 = scalar_select %p205, %s18, 0
      %s207 = smul.addr %s206, 168
      %s208 = smul.addr %s207, 8
      %s209 = scalar_lea.vmem %s2, %s208
      %s210 = smul.u32 7, %s19
      %p211 = scmp.lt.s32.totalorder %s18, 0
      %s212 = scalar_select %p211, %s18, 0
      %p213 = scmp.lt.s32.totalorder %s210, 13
      %s214 = scalar_select %p213, %s210, 13
      %s215 = smul.addr %s214, 2
      %s216 = smul.addr %s212, 28
      %s217 = sadd.s32 %s215, %s216
      %s218 = smul.addr %s217, 8
      %s219 = scalar_lea.vmem %s3, %s218
      %s220 = smul.u32 7, %s19
      %v222 = vld [vmem:[%s203] sm:$0xff]
      %v223 = vld [vmem:[%s203 + $0x8] sm:$0xff]
      %v224 = vld [vmem:[%s203 + $0x10] sm:$0xff]
      %v225 = vld [vmem:[%s203 + $0x18] sm:$0xff]
      %v226 = vld [vmem:[%s203 + $0x20] sm:$0xff]
      %v227 = vld [vmem:[%s203 + $0x28] sm:$0xff]
      %v228 = vld [vmem:[%s203 + $0x30] sm:$0xff]
      %v229 = vld [vmem:[%s203 + $0x38] sm:$0xff]
      %v230 = vld [vmem:[%s203 + $0x40] sm:$0xff]
      %v231 = vld [vmem:[%s203 + $0x48] sm:$0xff]
      %v232 = vld [vmem:[%s203 + $0x50] sm:$0xff]
      %v233 = vld [vmem:[%s203 + $0x58] sm:$0xff]
      %v234 = vld [vmem:[%s203 + $0x60] sm:$0xff]
      %v235 = vld [vmem:[%s203 + $0x68] sm:$0xff]
      %v236 = vld [vmem:[%s203 + $0x70] sm:$0xff]
      %v237 = vld [vmem:[%s203 + $0x78] sm:$0xff]
      %v238 = vld [vmem:[%s203 + $0x80] sm:$0xff]
      %v239 = vld [vmem:[%s203 + $0x88] sm:$0xff]
      %v240 = vld [vmem:[%s203 + $0x90] sm:$0xff]
      %v241 = vld [vmem:[%s203 + $0x98] sm:$0xff]
      %v242 = vld [vmem:[%s203 + $0xa0] sm:$0xff]
      %v243 = vunpack.c.l.bf16 %v222
      %v244 = vunpack.c.h.bf16 %v222
      %v245 = vunpack.c.l.bf16 %v223
      %v246 = vunpack.c.h.bf16 %v223
      %v247 = vunpack.c.l.bf16 %v224
      %v248 = vunpack.c.h.bf16 %v224
      %v249 = vunpack.c.l.bf16 %v225
      %v250 = vunpack.c.h.bf16 %v225
      %v251 = vunpack.c.l.bf16 %v226
      %v252 = vunpack.c.h.bf16 %v226
      %v253 = vunpack.c.l.bf16 %v227
      %v254 = vunpack.c.h.bf16 %v227
      %v255 = vunpack.c.l.bf16 %v228
      %v256 = vunpack.c.h.bf16 %v228
      %v257 = vunpack.c.l.bf16 %v229
      %v258 = vunpack.c.h.bf16 %v229
      %v259 = vunpack.c.l.bf16 %v230
      %v260 = vunpack.c.h.bf16 %v230
      %v261 = vunpack.c.l.bf16 %v231
      %v262 = vunpack.c.h.bf16 %v231
      %v263 = vunpack.c.l.bf16 %v232
      %v264 = vunpack.c.h.bf16 %v232
      %v265 = vunpack.c.l.bf16 %v233
      %v266 = vunpack.c.h.bf16 %v233
      %v267 = vunpack.c.l.bf16 %v234
      %v268 = vunpack.c.h.bf16 %v234
      %v269 = vunpack.c.l.bf16 %v235
      %v270 = vunpack.c.h.bf16 %v235
      %v271 = vunpack.c.l.bf16 %v236
      %v272 = vunpack.c.h.bf16 %v236
      %v273 = vunpack.c.l.bf16 %v237
      %v274 = vunpack.c.h.bf16 %v237
      %v275 = vunpack.c.l.bf16 %v238
      %v276 = vunpack.c.h.bf16 %v238
      %v277 = vunpack.c.l.bf16 %v239
      %v278 = vunpack.c.h.bf16 %v239
      %v279 = vunpack.c.l.bf16 %v240
      %v280 = vunpack.c.h.bf16 %v240
      %v281 = vunpack.c.l.bf16 %v241
      %v282 = vunpack.c.h.bf16 %v241
      %v283 = vunpack.c.l.bf16 %v242
      %v284 = vunpack.c.h.bf16 %v242
      %v285 = vld [vmem:[%s1] sm:$0x3f]
      %v287 = vlaneseq
      %v288 = vshrl.u32 %v287, 7
      %v289 = vsub.s32 0, %v288
      %v290 = vrot.slane %v285, %v289
      %v291 = vlaneseq
      %v292 = vshrl.u32 %v291, 7
      %v293 = vsub.s32 1, %v292
      %v294 = vrot.slane %v285, %v293
      %v295 = vlaneseq
      %v296 = vshrl.u32 %v295, 7
      %v297 = vsub.s32 2, %v296
      %v298 = vrot.slane %v285, %v297
      %v299 = vlaneseq
      %v300 = vshrl.u32 %v299, 7
      %v301 = vsub.s32 3, %v300
      %v302 = vrot.slane %v285, %v301
      %v303 = vlaneseq
      %v304 = vshrl.u32 %v303, 7
      %v305 = vsub.s32 4, %v304
      %v306 = vrot.slane %v285, %v305
      %v307 = vlaneseq
      %v308 = vshrl.u32 %v307, 7
      %v309 = vsub.s32 5, %v308
      %v310 = vrot.slane %v285, %v309
      %v317 = vmul.f32 %v243, %v290
      %v318 = vmul.f32 %v244, %v294
      %v319 = vmul.f32 %v245, %v298
      %v320 = vmul.f32 %v246, %v302
      %v321 = vmul.f32 %v247, %v306
      %v322 = vmul.f32 %v248, %v310
      %v323 = vmul.f32 %v249, %v290
      %v324 = vmul.f32 %v250, %v294
      %v325 = vmul.f32 %v251, %v298
      %v326 = vmul.f32 %v252, %v302
      %v327 = vmul.f32 %v253, %v306
      %v328 = vmul.f32 %v254, %v310
      %v329 = vmul.f32 %v255, %v290
      %v330 = vmul.f32 %v256, %v294
      %v331 = vmul.f32 %v257, %v298
      %v332 = vmul.f32 %v258, %v302
      %v333 = vmul.f32 %v259, %v306
      %v334 = vmul.f32 %v260, %v310
      %v335 = vmul.f32 %v261, %v290
      %v336 = vmul.f32 %v262, %v294
      %v337 = vmul.f32 %v263, %v298
      %v338 = vmul.f32 %v264, %v302
      %v339 = vmul.f32 %v265, %v306
      %v340 = vmul.f32 %v266, %v310
      %v341 = vmul.f32 %v267, %v290
      %v342 = vmul.f32 %v268, %v294
      %v343 = vmul.f32 %v269, %v298
      %v344 = vmul.f32 %v270, %v302
      %v345 = vmul.f32 %v271, %v306
      %v346 = vmul.f32 %v272, %v310
      %v347 = vmul.f32 %v273, %v290
      %v348 = vmul.f32 %v274, %v294
      %v349 = vmul.f32 %v275, %v298
      %v350 = vmul.f32 %v276, %v302
      %v351 = vmul.f32 %v277, %v306
      %v352 = vmul.f32 %v278, %v310
      %v353 = vmul.f32 %v279, %v290
      %v354 = vmul.f32 %v280, %v294
      %v355 = vmul.f32 %v281, %v298
      %v356 = vmul.f32 %v282, %v302
      %v357 = vmul.f32 %v283, %v306
      %v358 = vmul.f32 %v284, %v310
      %v359 = vpack.c.bf16 %v323, %v317
      %v360 = vpack.c.bf16 %v324, %v318
      %v361 = vpack.c.bf16 %v325, %v319
      %v362 = vpack.c.bf16 %v326, %v320
      %v363 = vpack.c.bf16 %v327, %v321
      %v364 = vpack.c.bf16 %v328, %v322
      %v365 = vpack.c.bf16 %v335, %v329
      %v366 = vpack.c.bf16 %v336, %v330
      %v367 = vpack.c.bf16 %v337, %v331
      %v368 = vpack.c.bf16 %v338, %v332
      %v369 = vpack.c.bf16 %v339, %v333
      %v370 = vpack.c.bf16 %v340, %v334
      %v371 = vpack.c.bf16 %v347, %v341
      %v372 = vpack.c.bf16 %v348, %v342
      %v373 = vpack.c.bf16 %v349, %v343
      %v374 = vpack.c.bf16 %v350, %v344
      %v375 = vpack.c.bf16 %v351, %v345
      %v376 = vpack.c.bf16 %v352, %v346
      %v377 = vpack.c.bf16 %v353, %v353
      %v378 = vpack.c.bf16 %v354, %v354
      %v379 = vpack.c.bf16 %v355, %v355
      %v380 = vpack.c.bf16 %v356, %v356
      %v381 = vpack.c.bf16 %v357, %v357
      %v382 = vpack.c.bf16 %v358, %v358
      %v383 = vld [vmem:[%s209] sm:$0xff]
      %v384 = vld [vmem:[%s209 + $0x8] sm:$0xff]
      %v385 = vld [vmem:[%s209 + $0x10] sm:$0xff]
      %v386 = vld [vmem:[%s209 + $0x18] sm:$0xff]
      %v387 = vld [vmem:[%s209 + $0x20] sm:$0xff]
      %v388 = vld [vmem:[%s209 + $0x28] sm:$0xff]
      %v389 = vld [vmem:[%s209 + $0x30] sm:$0xff]
      %v390 = vld [vmem:[%s209 + $0x38] sm:$0xff]
      %v391 = vld [vmem:[%s209 + $0x40] sm:$0xff]
      %v392 = vld [vmem:[%s209 + $0x48] sm:$0xff]
      %v393 = vld [vmem:[%s209 + $0x50] sm:$0xff]
      %v394 = vld [vmem:[%s209 + $0x58] sm:$0xff]
      %v395 = vld [vmem:[%s209 + $0x60] sm:$0xff]
      %v396 = vld [vmem:[%s209 + $0x68] sm:$0xff]
      %v397 = vld [vmem:[%s209 + $0x70] sm:$0xff]
      %v398 = vld [vmem:[%s209 + $0x78] sm:$0xff]
      %v399 = vld [vmem:[%s209 + $0x80] sm:$0xff]
      %v400 = vld [vmem:[%s209 + $0x88] sm:$0xff]
      %v401 = vld [vmem:[%s209 + $0x90] sm:$0xff]
      %v402 = vld [vmem:[%s209 + $0x98] sm:$0xff]
      %v403 = vld [vmem:[%s209 + $0xa0] sm:$0xff]
      %v404 = vld [vmem:[%s209 + $0xa8] sm:$0xff]
      %v405 = vld [vmem:[%s209 + $0xb0] sm:$0xff]
      %v406 = vld [vmem:[%s209 + $0xb8] sm:$0xff]
      %v407 = vld [vmem:[%s209 + $0xc0] sm:$0xff]
      %v408 = vld [vmem:[%s209 + $0xc8] sm:$0xff]
      %v409 = vld [vmem:[%s209 + $0xd0] sm:$0xff]
      %v410 = vld [vmem:[%s209 + $0xd8] sm:$0xff]
      %v411 = vld [vmem:[%s209 + $0xe0] sm:$0xff]
      %v412 = vld [vmem:[%s209 + $0xe8] sm:$0xff]
      %v413 = vld [vmem:[%s209 + $0xf0] sm:$0xff]
      %v414 = vld [vmem:[%s209 + $0xf8] sm:$0xff]
      %v415 = vld [vmem:[%s209 + $0x100] sm:$0xff]
      %v416 = vld [vmem:[%s209 + $0x108] sm:$0xff]
      %v417 = vld [vmem:[%s209 + $0x110] sm:$0xff]
      %v418 = vld [vmem:[%s209 + $0x118] sm:$0xff]
      %v419 = vld [vmem:[%s209 + $0x120] sm:$0xff]
      %v420 = vld [vmem:[%s209 + $0x128] sm:$0xff]
      %v421 = vld [vmem:[%s209 + $0x130] sm:$0xff]
      %v422 = vld [vmem:[%s209 + $0x138] sm:$0xff]
      %v423 = vld [vmem:[%s209 + $0x140] sm:$0xff]
      %v424 = vld [vmem:[%s209 + $0x148] sm:$0xff]
      %v425 = vld [vmem:[%s209 + $0x150] sm:$0xff]
      %v426 = vld [vmem:[%s209 + $0x158] sm:$0xff]
      %v427 = vld [vmem:[%s209 + $0x160] sm:$0xff]
      %v428 = vld [vmem:[%s209 + $0x168] sm:$0xff]
      %v429 = vld [vmem:[%s209 + $0x170] sm:$0xff]
      %v430 = vld [vmem:[%s209 + $0x178] sm:$0xff]
      %v431 = vld [vmem:[%s209 + $0x180] sm:$0xff]
      %v432 = vld [vmem:[%s209 + $0x188] sm:$0xff]
      %v433 = vld [vmem:[%s209 + $0x190] sm:$0xff]
      %v434 = vld [vmem:[%s209 + $0x198] sm:$0xff]
      %v435 = vld [vmem:[%s209 + $0x1a0] sm:$0xff]
      %v436 = vld [vmem:[%s209 + $0x1a8] sm:$0xff]
      %v437 = vld [vmem:[%s209 + $0x1b0] sm:$0xff]
      %v438 = vld [vmem:[%s209 + $0x1b8] sm:$0xff]
      %v439 = vld [vmem:[%s209 + $0x1c0] sm:$0xff]
      %v440 = vld [vmem:[%s209 + $0x1c8] sm:$0xff]
      %v441 = vld [vmem:[%s209 + $0x1d0] sm:$0xff]
      %v442 = vld [vmem:[%s209 + $0x1d8] sm:$0xff]
      %v443 = vld [vmem:[%s209 + $0x1e0] sm:$0xff]
      %v444 = vld [vmem:[%s209 + $0x1e8] sm:$0xff]
      %v445 = vld [vmem:[%s209 + $0x1f0] sm:$0xff]
      %v446 = vld [vmem:[%s209 + $0x1f8] sm:$0xff]
      %v447 = vld [vmem:[%s209 + $0x200] sm:$0xff]
      %v448 = vld [vmem:[%s209 + $0x208] sm:$0xff]
      %v449 = vld [vmem:[%s209 + $0x210] sm:$0xff]
      %v450 = vld [vmem:[%s209 + $0x218] sm:$0xff]
      %v451 = vld [vmem:[%s209 + $0x220] sm:$0xff]
      %v452 = vld [vmem:[%s209 + $0x228] sm:$0xff]
      %v453 = vld [vmem:[%s209 + $0x230] sm:$0xff]
      %v454 = vld [vmem:[%s209 + $0x238] sm:$0xff]
      %v455 = vld [vmem:[%s209 + $0x240] sm:$0xff]
      %v456 = vld [vmem:[%s209 + $0x248] sm:$0xff]
      %v457 = vld [vmem:[%s209 + $0x250] sm:$0xff]
      %v458 = vld [vmem:[%s209 + $0x258] sm:$0xff]
      %v459 = vld [vmem:[%s209 + $0x260] sm:$0xff]
      %v460 = vld [vmem:[%s209 + $0x268] sm:$0xff]
      %v461 = vld [vmem:[%s209 + $0x270] sm:$0xff]
      %v462 = vld [vmem:[%s209 + $0x278] sm:$0xff]
      %v463 = vld [vmem:[%s209 + $0x280] sm:$0xff]
      %v464 = vld [vmem:[%s209 + $0x288] sm:$0xff]
      %v465 = vld [vmem:[%s209 + $0x290] sm:$0xff]
      %v466 = vld [vmem:[%s209 + $0x298] sm:$0xff]
      %v467 = vld [vmem:[%s209 + $0x2a0] sm:$0xff]
      %v468 = vld [vmem:[%s209 + $0x2a8] sm:$0xff]
      %v469 = vld [vmem:[%s209 + $0x2b0] sm:$0xff]
      %v470 = vld [vmem:[%s209 + $0x2b8] sm:$0xff]
      %v471 = vld [vmem:[%s209 + $0x2c0] sm:$0xff]
      %v472 = vld [vmem:[%s209 + $0x2c8] sm:$0xff]
      %v473 = vld [vmem:[%s209 + $0x2d0] sm:$0xff]
      %v474 = vld [vmem:[%s209 + $0x2d8] sm:$0xff]
      %v475 = vld [vmem:[%s209 + $0x2e0] sm:$0xff]
      %v476 = vld [vmem:[%s209 + $0x2e8] sm:$0xff]
      %v477 = vld [vmem:[%s209 + $0x2f0] sm:$0xff]
      %v478 = vld [vmem:[%s209 + $0x2f8] sm:$0xff]
      %v479 = vld [vmem:[%s209 + $0x300] sm:$0xff]
      %v480 = vld [vmem:[%s209 + $0x308] sm:$0xff]
      %v481 = vld [vmem:[%s209 + $0x310] sm:$0xff]
      %v482 = vld [vmem:[%s209 + $0x318] sm:$0xff]
      %v483 = vld [vmem:[%s209 + $0x320] sm:$0xff]
      %v484 = vld [vmem:[%s209 + $0x328] sm:$0xff]
      %v485 = vld [vmem:[%s209 + $0x330] sm:$0xff]
      %v486 = vld [vmem:[%s209 + $0x338] sm:$0xff]
      %v487 = vld [vmem:[%s209 + $0x340] sm:$0xff]
      %v488 = vld [vmem:[%s209 + $0x348] sm:$0xff]
      %v489 = vld [vmem:[%s209 + $0x350] sm:$0xff]
      %v490 = vld [vmem:[%s209 + $0x358] sm:$0xff]
      %v491 = vld [vmem:[%s209 + $0x360] sm:$0xff]
      %v492 = vld [vmem:[%s209 + $0x368] sm:$0xff]
      %v493 = vld [vmem:[%s209 + $0x370] sm:$0xff]
      %v494 = vld [vmem:[%s209 + $0x378] sm:$0xff]
      %v495 = vld [vmem:[%s209 + $0x380] sm:$0xff]
      %v496 = vld [vmem:[%s209 + $0x388] sm:$0xff]
      %v497 = vld [vmem:[%s209 + $0x390] sm:$0xff]
      %v498 = vld [vmem:[%s209 + $0x398] sm:$0xff]
      %v499 = vld [vmem:[%s209 + $0x3a0] sm:$0xff]
      %v500 = vld [vmem:[%s209 + $0x3a8] sm:$0xff]
      %v501 = vld [vmem:[%s209 + $0x3b0] sm:$0xff]
      %v502 = vld [vmem:[%s209 + $0x3b8] sm:$0xff]
      %v503 = vld [vmem:[%s209 + $0x3c0] sm:$0xff]
      %v504 = vld [vmem:[%s209 + $0x3c8] sm:$0xff]
      %v505 = vld [vmem:[%s209 + $0x3d0] sm:$0xff]
      %v506 = vld [vmem:[%s209 + $0x3d8] sm:$0xff]
      %v507 = vld [vmem:[%s209 + $0x3e0] sm:$0xff]
      %v508 = vld [vmem:[%s209 + $0x3e8] sm:$0xff]
      %v509 = vld [vmem:[%s209 + $0x3f0] sm:$0xff]
      %v510 = vld [vmem:[%s209 + $0x3f8] sm:$0xff]
      %v511 = vld [vmem:[%s209 + $0x400] sm:$0xff]
      %v512 = vld [vmem:[%s209 + $0x408] sm:$0xff]
      %v513 = vld [vmem:[%s209 + $0x410] sm:$0xff]
      %v514 = vld [vmem:[%s209 + $0x418] sm:$0xff]
      %v515 = vld [vmem:[%s209 + $0x420] sm:$0xff]
      %v516 = vld [vmem:[%s209 + $0x428] sm:$0xff]
      %v517 = vld [vmem:[%s209 + $0x430] sm:$0xff]
      %v518 = vld [vmem:[%s209 + $0x438] sm:$0xff]
      %v519 = vld [vmem:[%s209 + $0x440] sm:$0xff]
      %v520 = vld [vmem:[%s209 + $0x448] sm:$0xff]
      %v521 = vld [vmem:[%s209 + $0x450] sm:$0xff]
      %v522 = vld [vmem:[%s209 + $0x458] sm:$0xff]
      %v523 = vld [vmem:[%s209 + $0x460] sm:$0xff]
      %v524 = vld [vmem:[%s209 + $0x468] sm:$0xff]
      %v525 = vld [vmem:[%s209 + $0x470] sm:$0xff]
      %v526 = vld [vmem:[%s209 + $0x478] sm:$0xff]
      %v527 = vld [vmem:[%s209 + $0x480] sm:$0xff]
      %v528 = vld [vmem:[%s209 + $0x488] sm:$0xff]
      %v529 = vld [vmem:[%s209 + $0x490] sm:$0xff]
      %v530 = vld [vmem:[%s209 + $0x498] sm:$0xff]
      %v531 = vld [vmem:[%s209 + $0x4a0] sm:$0xff]
      %v532 = vld [vmem:[%s209 + $0x4a8] sm:$0xff]
      %v533 = vld [vmem:[%s209 + $0x4b0] sm:$0xff]
      %v534 = vld [vmem:[%s209 + $0x4b8] sm:$0xff]
      %v535 = vld [vmem:[%s209 + $0x4c0] sm:$0xff]
      %v536 = vld [vmem:[%s209 + $0x4c8] sm:$0xff]
      %v537 = vld [vmem:[%s209 + $0x4d0] sm:$0xff]
      %v538 = vld [vmem:[%s209 + $0x4d8] sm:$0xff]
      %v539 = vld [vmem:[%s209 + $0x4e0] sm:$0xff]
      %v540 = vld [vmem:[%s209 + $0x4e8] sm:$0xff]
      %v541 = vld [vmem:[%s209 + $0x4f0] sm:$0xff]
      %v542 = vld [vmem:[%s209 + $0x4f8] sm:$0xff]
      %v543 = vld [vmem:[%s209 + $0x500] sm:$0xff]
      %v544 = vld [vmem:[%s209 + $0x508] sm:$0xff]
      %v545 = vld [vmem:[%s209 + $0x510] sm:$0xff]
      %v546 = vld [vmem:[%s209 + $0x518] sm:$0xff]
      %v547 = vld [vmem:[%s209 + $0x520] sm:$0xff]
      %v548 = vld [vmem:[%s209 + $0x528] sm:$0xff]
      %v549 = vld [vmem:[%s209 + $0x530] sm:$0xff]
      %v550 = vld [vmem:[%s209 + $0x538] sm:$0xff]
      %v551 = vpack.c.bf16 %v385, %v383
      %v552 = vpack.c.bf16 %v386, %v384
      %v553 = vpack.c.bf16 %v389, %v387
      %v554 = vpack.c.bf16 %v390, %v388
      %v555 = vpack.c.bf16 %v393, %v391
      %v556 = vpack.c.bf16 %v394, %v392
      %v557 = vpack.c.bf16 %v397, %v395
      %v558 = vpack.c.bf16 %v398, %v396
      %v559 = vpack.c.bf16 %v401, %v399
      %v560 = vpack.c.bf16 %v402, %v400
      %v561 = vpack.c.bf16 %v405, %v403
      %v562 = vpack.c.bf16 %v406, %v404
      %v563 = vpack.c.bf16 %v409, %v407
      %v564 = vpack.c.bf16 %v410, %v408
      %v565 = vpack.c.bf16 %v413, %v411
      %v566 = vpack.c.bf16 %v414, %v412
      %v567 = vpack.c.bf16 %v417, %v415
      %v568 = vpack.c.bf16 %v418, %v416
      %v569 = vpack.c.bf16 %v421, %v419
      %v570 = vpack.c.bf16 %v422, %v420
      %v571 = vpack.c.bf16 %v425, %v423
      %v572 = vpack.c.bf16 %v426, %v424
      %v573 = vpack.c.bf16 %v429, %v427
      %v574 = vpack.c.bf16 %v430, %v428
      %v575 = vpack.c.bf16 %v433, %v431
      %v576 = vpack.c.bf16 %v434, %v432
      %v577 = vpack.c.bf16 %v437, %v435
      %v578 = vpack.c.bf16 %v438, %v436
      %v579 = vpack.c.bf16 %v441, %v439
      %v580 = vpack.c.bf16 %v442, %v440
      %v581 = vpack.c.bf16 %v445, %v443
      %v582 = vpack.c.bf16 %v446, %v444
      %v583 = vpack.c.bf16 %v449, %v447
      %v584 = vpack.c.bf16 %v450, %v448
      %v585 = vpack.c.bf16 %v453, %v451
      %v586 = vpack.c.bf16 %v454, %v452
      %v587 = vpack.c.bf16 %v457, %v455
      %v588 = vpack.c.bf16 %v458, %v456
      %v589 = vpack.c.bf16 %v461, %v459
      %v590 = vpack.c.bf16 %v462, %v460
      %v591 = vpack.c.bf16 %v465, %v463
      %v592 = vpack.c.bf16 %v466, %v464
      %v593 = vpack.c.bf16 %v469, %v467
      %v594 = vpack.c.bf16 %v470, %v468
      %v595 = vpack.c.bf16 %v473, %v471
      %v596 = vpack.c.bf16 %v474, %v472
      %v597 = vpack.c.bf16 %v477, %v475
      %v598 = vpack.c.bf16 %v478, %v476
      %v599 = vpack.c.bf16 %v481, %v479
      %v600 = vpack.c.bf16 %v482, %v480
      %v601 = vpack.c.bf16 %v485, %v483
      %v602 = vpack.c.bf16 %v486, %v484
      %v603 = vpack.c.bf16 %v489, %v487
      %v604 = vpack.c.bf16 %v490, %v488
      %v605 = vpack.c.bf16 %v493, %v491
      %v606 = vpack.c.bf16 %v494, %v492
      %v607 = vpack.c.bf16 %v497, %v495
      %v608 = vpack.c.bf16 %v498, %v496
      %v609 = vpack.c.bf16 %v501, %v499
      %v610 = vpack.c.bf16 %v502, %v500
      %v611 = vpack.c.bf16 %v505, %v503
      %v612 = vpack.c.bf16 %v506, %v504
      %v613 = vpack.c.bf16 %v509, %v507
      %v614 = vpack.c.bf16 %v510, %v508
      %v615 = vpack.c.bf16 %v513, %v511
      %v616 = vpack.c.bf16 %v514, %v512
      %v617 = vpack.c.bf16 %v517, %v515
      %v618 = vpack.c.bf16 %v518, %v516
      %v619 = vpack.c.bf16 %v521, %v519
      %v620 = vpack.c.bf16 %v522, %v520
      %v621 = vpack.c.bf16 %v525, %v523
      %v622 = vpack.c.bf16 %v526, %v524
      %v623 = vpack.c.bf16 %v529, %v527
      %v624 = vpack.c.bf16 %v530, %v528
      %v625 = vpack.c.bf16 %v533, %v531
      %v626 = vpack.c.bf16 %v534, %v532
      %v627 = vpack.c.bf16 %v537, %v535
      %v628 = vpack.c.bf16 %v538, %v536
      %v629 = vpack.c.bf16 %v541, %v539
      %v630 = vpack.c.bf16 %v542, %v540
      %v631 = vpack.c.bf16 %v545, %v543
      %v632 = vpack.c.bf16 %v546, %v544
      %v633 = vpack.c.bf16 %v549, %v547
      %v634 = vpack.c.bf16 %v550, %v548
      %vm635 = vcmask 261120
      %v637 = vsel %vm635, %v364, 0
      %v640 = vsel %vm635, %v370, 0
      %v643 = vsel %vm635, %v376, 0
      %v646 = vsel %vm635, %v382, 0
      %648 = vmatprep.subr.bf16.mxu0 %v552
      %649 = vmatpush1.bf16.msra.mxu0 %v551
      %650 = vmatprep.subr.bf16.mxu0 %v554
      %651 = vmatpush1.bf16.msra.mxu0 %v553
      %652 = vmatprep.subr.bf16.mxu0 %v556
      %653 = vmatpush1.bf16.msra.mxu0 %v555
      %654 = vmatprep.subr.bf16.mxu0 %v558
      %655 = vmatpush1.bf16.msra.mxu0 %v557
      %656 = vmatprep.subr.bf16.mxu0 %v560
      %657 = vmatpush1.bf16.msra.mxu0 %v559
      %658 = vmatprep.subr.bf16.mxu0 %v562
      %659 = vmatpush1.bf16.msra.mxu0 %v561
      %660 = vmatprep.subr.bf16.mxu0 %v564
      %661 = vmatpush1.bf16.msra.mxu0 %v563
      %662 = vmatprep.subr.bf16.mxu0 %v566
      %663 = vmatpush1.bf16.msra.mxu0 %v565
      %664 = vmatprep.subr.bf16.mxu0 %v568
      %665 = vmatpush1.bf16.msra.mxu0 %v567
      %666 = vmatprep.subr.bf16.mxu0 %v570
      %667 = vmatpush1.bf16.msra.mxu0 %v569
      %668 = vmatprep.subr.bf16.mxu0 %v572
      %669 = vmatpush1.bf16.msra.mxu0 %v571
      %670 = vmatprep.subr.bf16.mxu0 %v574
      %671 = vmatpush1.bf16.msra.mxu0 %v573
      %672 = vmatprep.subr.bf16.mxu0 %v576
      %673 = vmatpush1.bf16.msra.mxu0 %v575
      %674 = vmatprep.subr.bf16.mxu0 %v578
      %675 = vmatpush1.bf16.msra.mxu0 %v577
      %676 = vmatprep.subr.bf16.mxu0 %v580
      %677 = vmatpush1.bf16.msra.mxu0 %v579
      %678 = vmatprep.subr.bf16.mxu0 %v582
      %679 = vmatpush1.bf16.msra.mxu0 %v581
      %680 = vmatprep.mubr.bf16.mxu0 %v360
      %681 = vmatmul.mubr.bf16.gmra.mrb[0].mxu0 %v359
      %v682 = vpop.f32.mrb[0].mxu0
      %v683 = vadd.f32 0.0, %v682
      %v684 = vpop.f32.mrb[0].mxu0
      %v685 = vadd.f32 0.0, %v684
      %v686 = vpop.f32.mrb[0].mxu0
      %v687 = vadd.f32 0.0, %v686
      %v688 = vpop.f32.mrb[0].mxu0
      %v689 = vadd.f32 0.0, %v688
      %690 = vmatprep.mubr.bf16.mxu0 %v366
      %691 = vmatmul.mubr.bf16.gmra.mrb[0].mxu0 %v365
      %v692 = vpop.f32.mrb[0].mxu0
      %v693 = vadd.f32 0.0, %v692
      %v694 = vpop.f32.mrb[0].mxu0
      %v695 = vadd.f32 0.0, %v694
      %v696 = vpop.f32.mrb[0].mxu0
      %v697 = vadd.f32 0.0, %v696
      %v698 = vpop.f32.mrb[0].mxu0
      %v699 = vadd.f32 0.0, %v698
      %700 = vmatprep.mubr.bf16.mxu0 %v372
      %701 = vmatmul.mubr.bf16.gmra.mrb[0].mxu0 %v371
      %v702 = vpop.f32.mrb[0].mxu0
      %v703 = vadd.f32 0.0, %v702
      %v704 = vpop.f32.mrb[0].mxu0
      %v705 = vadd.f32 0.0, %v704
      %v706 = vpop.f32.mrb[0].mxu0
      %v707 = vadd.f32 0.0, %v706
      %v708 = vpop.f32.mrb[0].mxu0
      %v709 = vadd.f32 0.0, %v708
      %710 = vmatprep.mubr.bf16.mxu0 %v378
      %711 = vmatmul.mubr.bf16.gmra.mrb[0].mxu0 %v377
      %v712 = vpop.f32.mrb[0].mxu0
      %v713 = vadd.f32 0.0, %v712
      %v714 = vpop.f32.mrb[0].mxu0
      %v715 = vadd.f32 0.0, %v714
      %v716 = vpop.f32.mrb[0].mxu0
      %v717 = vpop.f32.mrb[0].mxu0
      %718 = vdwg.mxu0
      %719 = vmatprep.subr.bf16.mxu0 %v584
      %720 = vmatpush1.bf16.msra.mxu0 %v583
      %721 = vmatprep.subr.bf16.mxu0 %v586
      %722 = vmatpush1.bf16.msra.mxu0 %v585
      %723 = vmatprep.subr.bf16.mxu0 %v588
      %724 = vmatpush1.bf16.msra.mxu0 %v587
      %725 = vmatprep.subr.bf16.mxu0 %v590
      %726 = vmatpush1.bf16.msra.mxu0 %v589
      %727 = vmatprep.subr.bf16.mxu0 %v592
      %728 = vmatpush1.bf16.msra.mxu0 %v591
      %729 = vmatprep.subr.bf16.mxu0 %v594
      %730 = vmatpush1.bf16.msra.mxu0 %v593
      %731 = vmatprep.subr.bf16.mxu0 %v596
      %732 = vmatpush1.bf16.msra.mxu0 %v595
      %733 = vmatprep.subr.bf16.mxu0 %v598
      %734 = vmatpush1.bf16.msra.mxu0 %v597
      %735 = vmatprep.subr.bf16.mxu0 %v600
      %736 = vmatpush1.bf16.msra.mxu0 %v599
      %737 = vmatprep.subr.bf16.mxu0 %v602
      %738 = vmatpush1.bf16.msra.mxu0 %v601
      %739 = vmatprep.subr.bf16.mxu0 %v604
      %740 = vmatpush1.bf16.msra.mxu0 %v603
      %741 = vmatprep.subr.bf16.mxu0 %v606
      %742 = vmatpush1.bf16.msra.mxu0 %v605
      %743 = vmatprep.subr.bf16.mxu0 %v608
      %744 = vmatpush1.bf16.msra.mxu0 %v607
      %745 = vmatprep.subr.bf16.mxu0 %v610
      %746 = vmatpush1.bf16.msra.mxu0 %v609
      %747 = vmatprep.subr.bf16.mxu0 %v612
      %748 = vmatpush1.bf16.msra.mxu0 %v611
      %749 = vmatprep.subr.bf16.mxu0 %v614
      %750 = vmatpush1.bf16.msra.mxu0 %v613
      %751 = vmatprep.mubr.bf16.mxu0 %v362
      %752 = vmatmul.mubr.bf16.gmra.mrb[0].mxu0 %v361
      %v753 = vpop.f32.mrb[0].mxu0
      %v754 = vadd.f32 %v683, %v753
      %v755 = vpop.f32.mrb[0].mxu0
      %v756 = vadd.f32 %v685, %v755
      %v757 = vpop.f32.mrb[0].mxu0
      %v758 = vadd.f32 %v687, %v757
      %v759 = vpop.f32.mrb[0].mxu0
      %v760 = vadd.f32 %v689, %v759
      %761 = vmatprep.mubr.bf16.mxu0 %v368
      %762 = vmatmul.mubr.bf16.gmra.mrb[0].mxu0 %v367
      %v763 = vpop.f32.mrb[0].mxu0
      %v764 = vadd.f32 %v693, %v763
      %v765 = vpop.f32.mrb[0].mxu0
      %v766 = vadd.f32 %v695, %v765
      %v767 = vpop.f32.mrb[0].mxu0
      %v768 = vadd.f32 %v697, %v767
      %v769 = vpop.f32.mrb[0].mxu0
      %v770 = vadd.f32 %v699, %v769
      %771 = vmatprep.mubr.bf16.mxu0 %v374
      %772 = vmatmul.mubr.bf16.gmra.mrb[0].mxu0 %v373
      %v773 = vpop.f32.mrb[0].mxu0
      %v774 = vadd.f32 %v703, %v773
      %v775 = vpop.f32.mrb[0].mxu0
      %v776 = vadd.f32 %v705, %v775
      %v777 = vpop.f32.mrb[0].mxu0
      %v778 = vadd.f32 %v707, %v777
      %v779 = vpop.f32.mrb[0].mxu0
      %v780 = vadd.f32 %v709, %v779
      %781 = vmatprep.mubr.bf16.mxu0 %v380
      %782 = vmatmul.mubr.bf16.gmra.mrb[0].mxu0 %v379
      %v783 = vpop.f32.mrb[0].mxu0
      %v784 = vadd.f32 %v713, %v783
      %v785 = vpop.f32.mrb[0].mxu0
      %v786 = vadd.f32 %v715, %v785
      %v787 = vpop.f32.mrb[0].mxu0
      %v788 = vpop.f32.mrb[0].mxu0
      %789 = vdwg.mxu0
      %790 = vmatprep.subr.bf16.mxu0 %v616
      %791 = vmatpush1.bf16.msra.mxu0 %v615
      %792 = vmatprep.subr.bf16.mxu0 %v618
      %793 = vmatpush1.bf16.msra.mxu0 %v617
      %794 = vmatprep.subr.bf16.mxu0 %v620
      %795 = vmatpush1.bf16.msra.mxu0 %v619
      %796 = vmatprep.subr.bf16.mxu0 %v622
      %797 = vmatpush1.bf16.msra.mxu0 %v621
      %798 = vmatprep.subr.bf16.mxu0 %v624
      %799 = vmatpush1.bf16.msra.mxu0 %v623
      %800 = vmatprep.subr.bf16.mxu0 %v626
      %801 = vmatpush1.bf16.msra.mxu0 %v625
      %802 = vmatprep.subr.bf16.mxu0 %v628
      %803 = vmatpush1.bf16.msra.mxu0 %v627
      %804 = vmatprep.subr.bf16.mxu0 %v630
      %805 = vmatpush1.bf16.msra.mxu0 %v629
      %806 = vmatprep.subr.bf16.mxu0 %v632
      %807 = vmatpush1.bf16.msra.mxu0 %v631
      %808 = vmatprep.subr.bf16.mxu0 %v634
      %809 = vmatpush1.bf16.msra.mxu0 %v633
      %810 = vmatprep.subr.bf16.mxu0 0
      %811 = vmatpush1.bf16.msra.mxu0 0
      %812 = vmatprep.subr.bf16.mxu0 0
      %813 = vmatpush1.bf16.msra.mxu0 0
      %814 = vmatprep.subr.bf16.mxu0 0
      %815 = vmatpush1.bf16.msra.mxu0 0
      %816 = vmatprep.subr.bf16.mxu0 0
      %817 = vmatpush1.bf16.msra.mxu0 0
      %818 = vmatprep.subr.bf16.mxu0 0
      %819 = vmatpush1.bf16.msra.mxu0 0
      %820 = vmatprep.subr.bf16.mxu0 0
      %821 = vmatpush1.bf16.msra.mxu0 0
      %822 = vmatprep.mubr.bf16.mxu0 %v637
      %823 = vmatmul.mubr.bf16.gmra.mrb[0].mxu0 %v363
      %v824 = vpop.f32.mrb[0].mxu0
      %v825 = vadd.f32 %v754, %v824
      %v826 = vpop.f32.mrb[0].mxu0
      %v827 = vadd.f32 %v756, %v826
      %v828 = vpop.f32.mrb[0].mxu0
      %v829 = vadd.f32 %v758, %v828
      %v830 = vpop.f32.mrb[0].mxu0
      %v831 = vadd.f32 %v760, %v830
      %832 = vmatprep.mubr.bf16.mxu0 %v640
      %833 = vmatmul.mubr.bf16.gmra.mrb[0].mxu0 %v369
      %v834 = vpop.f32.mrb[0].mxu0
      %v835 = vadd.f32 %v764, %v834
      %v836 = vpop.f32.mrb[0].mxu0
      %v837 = vadd.f32 %v766, %v836
      %v838 = vpop.f32.mrb[0].mxu0
      %v839 = vadd.f32 %v768, %v838
      %v840 = vpop.f32.mrb[0].mxu0
      %v841 = vadd.f32 %v770, %v840
      %842 = vmatprep.mubr.bf16.mxu0 %v643
      %843 = vmatmul.mubr.bf16.gmra.mrb[0].mxu0 %v375
      %v844 = vpop.f32.mrb[0].mxu0
      %v845 = vadd.f32 %v774, %v844
      %v846 = vpop.f32.mrb[0].mxu0
      %v847 = vadd.f32 %v776, %v846
      %v848 = vpop.f32.mrb[0].mxu0
      %v849 = vadd.f32 %v778, %v848
      %v850 = vpop.f32.mrb[0].mxu0
      %v851 = vadd.f32 %v780, %v850
      %852 = vmatprep.mubr.bf16.mxu0 %v646
      %853 = vmatmul.mubr.bf16.gmra.mrb[0].mxu0 %v381
      %v854 = vpop.f32.mrb[0].mxu0
      %v855 = vadd.f32 %v784, %v854
      %v856 = vpop.f32.mrb[0].mxu0
      %v857 = vadd.f32 %v786, %v856
      %v858 = vpop.f32.mrb[0].mxu0
      %v859 = vpop.f32.mrb[0].mxu0
      %860 = vdwg.mxu0
      %861 = vst [vmem:[%s219] sm:$0xff] %v825
      %vm862 = vcmask 556032
      %863 = vst.msk [vmem:[%s219 + $0x8] sm:$0xff] %vm862, %v827
      %864 = vst [vmem:[%s219 + $0x10] sm:$0xff] %v829
      %865 = vst.msk [vmem:[%s219 + $0x18] sm:$0xff] %vm862, %v831
      %866 = vst [vmem:[%s219 + $0x20] sm:$0xff] %v835
      %867 = vst.msk [vmem:[%s219 + $0x28] sm:$0xff] %vm862, %v837
      %868 = vst [vmem:[%s219 + $0x30] sm:$0xff] %v839
      %869 = vst.msk [vmem:[%s219 + $0x38] sm:$0xff] %vm862, %v841
      %870 = vst [vmem:[%s219 + $0x40] sm:$0xff] %v845
      %871 = vst.msk [vmem:[%s219 + $0x48] sm:$0xff] %vm862, %v847
      %872 = vst [vmem:[%s219 + $0x50] sm:$0xff] %v849
      %873 = vst.msk [vmem:[%s219 + $0x58] sm:$0xff] %vm862, %v851
      %874 = vst [vmem:[%s219 + $0x60] sm:$0xff] %v855
      %875 = vst.msk [vmem:[%s219 + $0x68] sm:$0xff] %vm862, %v857
      %s876 = smul.u32 7, %s19
      %p877 = scmp.lt.s32.totalorder %s18, 0
      %s878 = scalar_select %p877, %s18, 0
      %p879 = scmp.lt.s32.totalorder %s876, 13
      %s880 = scalar_select %p879, %s876, 13
      %s881 = smul.addr %s880, 2
      %s882 = smul.addr %s878, 28
      %s883 = sadd.s32 %s881, %s882
      %s884 = smul.addr %s883, 8
      %s885 = scalar_lea.vmem %s3, %s884
      // Predicated region
      $region33: #{tpu_custom_call.1} parent=31 // pred_check
        %p886 = pneg %p119
      $region34: #{tpu_custom_call.1} parent=31 // pred_check_branch
        %888 = sbr.rel (%p886) target = $region36
      $region35: #{tpu_custom_call.1} parent=31 // pred_region
        %s889 = smul.u32 7, %s19
      $region36: #{tpu_custom_call.1} parent=31 // pred_fallthru
        _
    $region32: #{tpu_custom_call.1} parent=5 // pred_fallthru
      _
    %p890 = scmp.le.s32.totalorder 2, %s9
    // Predicated region
    $region37: #{tpu_custom_call.1} parent=5 // pred_check
      %p891 = pneg %p890
    $region38: #{tpu_custom_call.1} parent=5 // pred_check_branch
      %893 = sbr.rel (%p891) target = $region40
    $region39: #{tpu_custom_call.1} parent=5 // pred_region
      %s894 = ssub.s32 %s9, 2
      // Predicated region
      $region41: #{tpu_custom_call.1} parent=39 // pred_check
        %p895 = pneg %p125
      $region42: #{tpu_custom_call.1} parent=39 // pred_check_branch
        %897 = sbr.rel (%p895) target = $region44
      $region43: #{tpu_custom_call.1} parent=39 // pred_region
        %s898 = smul.u32 7, %s21
        %p899 = scmp.lt.s32.totalorder %s20, 0
        %s900 = scalar_select %p899, %s20, 0
        %p901 = scmp.lt.s32.totalorder %s898, 13
        %s902 = scalar_select %p901, %s898, 13
        %s903 = smul.addr %s902, 2
        %s904 = smul.addr %s900, 28
        %s905 = sadd.s32 %s903, %s904
        %s906 = smul.addr %s905, 8
        %s907 = scalar_lea.vmem %s3, %s906
      $region44: #{tpu_custom_call.1} parent=39 // pred_fallthru
        _
    $region40: #{tpu_custom_call.1} parent=5 // pred_fallthru
      _
  $region6: #{tpu_custom_call.1} parent=0 // loop_footer
    %s13 = sadd.s32 1, %s9
  $region7: #{tpu_custom_call.1} parent=0 // loop_footer_branch
    %8 = sbr.rel target = $region3
  $region8: #{tpu_custom_call.1} parent=0 // loop_exit
    _

</llo_original>
